<compile_context>
chip_gen: v5e
topology: v5e:2x2
jax: 0.10.0
libtpu: 0.0.40
codegen_flags: <defaults>
</compile_context>

<pallas_src>
import functools
import math

import jax
import jax.numpy as jnp
from jax.experimental import pallas as pl
from jax.experimental.pallas import tpu as pltpu


def _round_up(x, m):
    return (x + m - 1) // m * m


# -----------------------------------------------------------------------------
# Kernels
# -----------------------------------------------------------------------------
def _lora_kernel_full_n(x_ref, a_t_ref, b_t_ref, o_ref, *, scaling, lhs2_dtype):
    # 1-D grid over M; whole out_features in one tile -> no recompute of x@a_t.
    tmp = jnp.dot(x_ref[...], a_t_ref[...],
                  preferred_element_type=jnp.float32)          # [tm, rank] f32
    tmp = tmp * scaling                                        # scale the tiny tmp
    out = jnp.dot(tmp.astype(lhs2_dtype), b_t_ref[...],
                  preferred_element_type=jnp.float32)          # [tm, out] f32
    o_ref[...] = out.astype(o_ref.dtype)


def _lora_kernel_tiled_n(x_ref, a_t_ref, b_t_ref, o_ref, tmp_ref, *,
                         scaling, lhs2_dtype):
    # 2-D grid (M tiles, N tiles).  tmp = x @ a_t computed once per M tile and
    # cached in VMEM scratch; reused for every N tile (j axis is "arbitrary").
    @pl.when(pl.program_id(1) == 0)
    def _():
        tmp = jnp.dot(x_ref[...], a_t_ref[...],
                      preferred_element_type=jnp.float32)      # [tm, rank] f32
        tmp_ref[...] = (tmp * scaling).astype(tmp_ref.dtype)

    out = jnp.dot(tmp_ref[...], b_t_ref[...],
                  preferred_element_type=jnp.float32)          # [tm, tn] f32
    o_ref[...] = out.astype(o_ref.dtype)


# -----------------------------------------------------------------------------
# Wrapper
# -----------------------------------------------------------------------------
def lora_forward(x, a_t, b_t, *, alpha=1, tm_default=512, tn_default=512,
                 force_tiled_n=False):
    """LoRA eval-mode forward.

    x   : [..., in_features]
    a_t : [in_features, rank]   (lora_A pre-transposed once at load time)
    b_t : [rank, out_features]  (lora_B pre-transposed once at load time)
    """
    in_features, rank = a_t.shape
    rank_b, out_features = b_t.shape
    assert rank == rank_b, "a_t / b_t rank mismatch"
    scaling = alpha / rank

    lead = x.shape[:-1]
    M = math.prod(lead) if lead else 1
    x2 = x.reshape(M, in_features)

    xb = jnp.dtype(x.dtype).itemsize
    wb = jnp.dtype(a_t.dtype).itemsize
    # Keep the f32 path in f32; bf16 inputs get a single-pass bf16 MXU matmul.
    lhs2_dtype = jnp.float32 if b_t.dtype == jnp.float32 else b_t.dtype
    sb = jnp.dtype(lhs2_dtype).itemsize

    # ---- generation-aware VMEM budgeting -------------------------------------
    try:
        vmem_cap = int(pltpu.get_tpu_info().vmem_capacity_bytes)
    except Exception:
        vmem_cap = 64 << 20                          # conservative fallback
    # Leave headroom for Mosaic internal scratch / semaphores.
    vmem_limit_cap = min(int(vmem_cap * 0.82), 104 << 20)   # ~52 MiB v7x, ~100 MiB v5e/v6e
    tile_budget = max(vmem_limit_cap - (6 << 20), 8 << 20)

    a_bytes = 2 * in_features * rank * wb            # a_t (double-buffered)

    # Can the full out_features dimension live in one output tile?
    full_w = a_bytes + 2 * rank * out_features * wb
    full_row = 2 * (in_features + out_features) * xb + rank * sb
    tm_cap_full = (tile_budget - full_w) // full_row if tile_budget > full_w else 0
    use_full_n = (not force_tiled_n) and tm_cap_full >= min(M, 256)

    if use_full_n:
        tn = out_features
        out_p = out_features
        tm_cap = int(tm_cap_full)
    else:
        tn = min(_round_up(max(tn_default, 128), 128), _round_up(out_features, 128))
        out_p = _round_up(out_features, tn)
        tiled_w = a_bytes + 2 * rank * tn * wb
        row_b = 2 * (in_features + tn) * xb + rank * sb
        tm_cap = int((tile_budget - tiled_w) // row_b) if tile_budget > tiled_w else 8
        tm_cap = max(tm_cap, 8)

    # ---- choose the M tile ----------------------------------------------------
    def _choose_tm(m, cap, default):
        cap = max(8, cap)
        if m <= cap:
            # Whole M fits in one tile; split in two when large enough so both
            # TensorCores get work on multi-core parts (v7x megacore).
            if m >= 512 and m % 256 == 0 and m // 2 <= cap:
                return m // 2
            return m
        tm_ = min(default, cap)
        tm_ = max(128, (tm_ // 128) * 128)
        if m % tm_ != 0:
            lo = max(256, tm_ // 2)
            for cand in range(tm_, lo - 1, -128):
                if m % cand == 0:          # divisor -> no host-side pad/slice
                    return cand
        return tm_

    tm = _choose_tm(M, tm_cap, tm_default)
    M_pad = _round_up(M, tm)

    # ---- host-side padding (last resort; no-op when aligned) ------------------
    if M_pad != M:
        # TODO(synk): in-kernel ragged last-M-tile masking would avoid this pass.
        x2 = jnp.pad(x2, ((0, M_pad - M), (0, 0)))
    b_t_p = b_t
    if out_p != out_features:
        b_t_p = jnp.pad(b_t, ((0, 0), (0, out_p - out_features)))

    m_tiles = M_pad // tm
    n_tiles = out_p // tn

    needed = (2 * tm * in_features * xb + 2 * tm * tn * xb
              + a_bytes + 2 * rank * tn * wb + tm * rank * sb)
    vmem_limit = int(min(vmem_limit_cap, max(32 << 20, needed + (6 << 20))))

    if use_full_n:
        kernel = functools.partial(_lora_kernel_full_n, scaling=scaling,
                                   lhs2_dtype=lhs2_dtype)
        grid = (m_tiles,)
        in_specs = [
            pl.BlockSpec((tm, in_features), lambda i: (i, 0)),
            pl.BlockSpec((in_features, rank), lambda i: (0, 0)),
            pl.BlockSpec((rank, tn), lambda i: (0, 0)),
        ]
        out_specs = pl.BlockSpec((tm, tn), lambda i: (i, 0))
        scratch_shapes = []
        dim_sem = ("parallel",)
    else:
        kernel = functools.partial(_lora_kernel_tiled_n, scaling=scaling,
                                   lhs2_dtype=lhs2_dtype)
        grid = (m_tiles, n_tiles)
        in_specs = [
            pl.BlockSpec((tm, in_features), lambda i, j: (i, 0)),
            pl.BlockSpec((in_features, rank), lambda i, j: (0, 0)),
            pl.BlockSpec((rank, tn), lambda i, j: (0, j)),
        ]
        out_specs = pl.BlockSpec((tm, tn), lambda i, j: (i, j))
        scratch_shapes = [pltpu.VMEM((tm, rank), lhs2_dtype)]
        # N axis carries the tmp scratch -> must be sequential ("arbitrary");
        # megacore shards the M axis.
        dim_sem = ("parallel", "arbitrary")

    out = pl.pallas_call(
        kernel,
        out_shape=jax.ShapeDtypeStruct((M_pad, out_p), x.dtype),
        grid_spec=pltpu.PrefetchScalarGridSpec(
            num_scalar_prefetch=0,
            grid=grid,
            in_specs=in_specs,
            out_specs=out_specs,
            scratch_shapes=scratch_shapes,
        ),
        compiler_params=pltpu.CompilerParams(
            dimension_semantics=dim_sem,
            vmem_limit_bytes=vmem_limit,
        ),
    )(x2, a_t, b_t_p)

    if M_pad != M or out_p != out_features:
        out = out[:M, :out_features]
    return out.reshape(*lead, out_features)


# -----------------------------------------------------------------------------
# Self-test
# -----------------------------------------------------------------------------
if __name__ == "__main__":
    key = jax.random.PRNGKey(0)

    # ---------- Test 1: module-consistent small shapes (full-N fast path) -----
    in_features, out_features, rank, alpha = 32, 32, 4, 1
    batch, seq = 2, 8

    kx, ka, kb, kx2, ka2, kb2 = jax.random.split(key, 6)
    x = jax.random.normal(kx, (batch, seq, in_features), dtype=jnp.float32)

    # lora_A: kaiming_uniform_(a=sqrt(5)) -> U(-1/sqrt(in), 1/sqrt(in))
    bound_a = 1.0 / math.sqrt(in_features)
    lora_A = jax.random.uniform(ka, (rank, in_features),
                                minval=-bound_a, maxval=bound_a, dtype=jnp.float32)
    # reset_parameters() zeros lora_B; use a small deterministic nonzero init
    # here so the kernel output is non-trivial to verify.
    lora_B = 0.02 * jax.random.normal(kb, (out_features, rank), dtype=jnp.float32)

    # Pre-transpose ONCE at weight-load time; the wrapper never transposes.
    a_t = jnp.transpose(lora_A)   # [in_features, rank]
    b_t = jnp.transpose(lora_B)   # [rank, out_features]

    # Pure-JAX reference (eval-mode dropout == identity).
    ref = (x @ lora_A.T @ lora_B.T) * (alpha / rank)

    out = jax.block_until_ready(lora_forward(x, a_t, b_t, alpha=alpha))
    assert out.shape == (batch, seq, out_features)
    assert jnp.allclose(out, ref, atol=1e-5, rtol=1e-5)

    # bf16 data-movement path (f32 accumulation, bf16 MXU second matmul).
    out_bf16 = jax.block_until_ready(
        lora_forward(x.astype(jnp.bfloat16), a_t.astype(jnp.bfloat16),
                     b_t.astype(jnp.bfloat16), alpha=alpha))
    assert out_bf16.shape == (batch, seq, out_features)
    assert jnp.allclose(out_bf16.astype(jnp.float32), ref, atol=1e-2, rtol=5e-2)

    # ---------- Test 2: exercise the tiled-N (scratch-cached tmp) kernel ------
    in2, out2, rank2 = 64, 256, 4
    x_b = jax.random.normal(kx2, (batch, seq, in2), dtype=jnp.float32)
    A2 = jax.random.uniform(ka2, (rank2, in2), minval=-1.0 / math.sqrt(in2),
                            maxval=1.0 / math.sqrt(in2), dtype=jnp.float32)
    B2 = 0.02 * jax.random.normal(kb2, (out2, rank2), dtype=jnp.float32)
    ref2 = (x_b @ A2.T @ B2.T) * (alpha / rank2)
    out2_k = jax.block_until_ready(
        lora_forward(x_b, jnp.transpose(A2), jnp.transpose(B2), alpha=alpha,
                     tn_default=128, force_tiled_n=True))
    assert out2_k.shape == (batch, seq, out2)
    assert jnp.allclose(out2_k, ref2, atol=1e-5, rtol=1e-5)

    print("KERNEL_OK")
</pallas_src>

<mosaic_0001>
module attributes {stable_mosaic.version = 11 : i64} {
  func.func @_lora_kernel_full_n(%arg0: i32, %arg1: memref<16x32xf32, #tpu.memory_space<vmem>>, %arg2: memref<32x4xf32, #tpu.memory_space<vmem>>, %arg3: memref<4x32xf32, #tpu.memory_space<vmem>>, %arg4: memref<16x32xf32, #tpu.memory_space<vmem>>) attributes {dimension_semantics = [#tpu.dimension_semantics<parallel>], iteration_bounds = array<i64: 1>, scalar_prefetch = 0 : i64, scratch_operands = 0 : i64, tpu.core_type = #tpu.core_type<tc>, window_params = [{transform_indices = @transform_0, window_bounds = array<i64: 16, 32>}, {pipeline_mode = #tpu.pipeline_mode<synchronous>, transform_indices = @transform_1, window_bounds = array<i64: 32, 4>}, {pipeline_mode = #tpu.pipeline_mode<synchronous>, transform_indices = @transform_2, window_bounds = array<i64: 4, 32>}, {transform_indices = @transform_3, window_bounds = array<i64: 16, 32>}]} {
    %c0 = arith.constant 0 : index
    %c0_0 = arith.constant 0 : index
    %0 = vector.load %arg1[%c0, %c0_0] : memref<16x32xf32, #tpu.memory_space<vmem>>, vector<16x32xf32>
    %c0_1 = arith.constant 0 : index
    %c0_2 = arith.constant 0 : index
    %1 = vector.load %arg2[%c0_1, %c0_2] : memref<32x4xf32, #tpu.memory_space<vmem>>, vector<32x4xf32>
    %cst = arith.constant dense<0.000000e+00> : vector<16x4xf32>
    %2 = tpu.matmul %0, %1, %cst {dimension_numbers = #tpu.dot_dimension_numbers<[1], [0], [0], [1], [0, 0, 1, 1], [], []>} : vector<16x32xf32>, vector<32x4xf32>, vector<16x4xf32> -> vector<16x4xf32>
    %cst_3 = arith.constant 2.500000e-01 : f32
    %3 = vector.broadcast %cst_3 : f32 to vector<16x4xf32>
    %4 = arith.mulf %2, %3 : vector<16x4xf32>
    %c0_4 = arith.constant 0 : index
    %c0_5 = arith.constant 0 : index
    %5 = vector.load %arg3[%c0_4, %c0_5] : memref<4x32xf32, #tpu.memory_space<vmem>>, vector<4x32xf32>
    %cst_6 = arith.constant dense<0.000000e+00> : vector<16x32xf32>
    %6 = tpu.matmul %4, %5, %cst_6 {dimension_numbers = #tpu.dot_dimension_numbers<[1], [0], [0], [1], [0, 0, 1, 1], [], []>} : vector<16x4xf32>, vector<4x32xf32>, vector<16x32xf32> -> vector<16x32xf32>
    %c0_7 = arith.constant 0 : index
    %c0_8 = arith.constant 0 : index
    %7 = vector.load %arg4[%c0_7, %c0_8] : memref<16x32xf32, #tpu.memory_space<vmem>>, vector<16x32xf32>
    tpu.vector_store %arg4[%c0_7, %c0_8], %6 {strides = array<i32>} : memref<16x32xf32, #tpu.memory_space<vmem>>, vector<16x32xf32>,
    return
  }
  func.func @transform_0(%arg0: i32) -> (i32, i32) {
    %c0_i32 = arith.constant 0 : i32
    %c0_i32_0 = arith.constant 0 : i32
    return %arg0, %c0_i32 : i32, i32
  }
  func.func @transform_1(%arg0: i32) -> (i32, i32) {
    %c0_i32 = arith.constant 0 : i32
    %c0_i32_0 = arith.constant 0 : i32
    %c0_i32_1 = arith.constant 0 : i32
    return %c0_i32, %c0_i32_0 : i32, i32
  }
  func.func @transform_2(%arg0: i32) -> (i32, i32) {
    %c0_i32 = arith.constant 0 : i32
    %c0_i32_0 = arith.constant 0 : i32
    %c0_i32_1 = arith.constant 0 : i32
    return %c0_i32, %c0_i32_0 : i32, i32
  }
  func.func @transform_3(%arg0: i32) -> (i32, i32) {
    %c0_i32 = arith.constant 0 : i32
    %c0_i32_0 = arith.constant 0 : i32
    return %arg0, %c0_i32 : i32, i32
  }
}

</mosaic_0001>

<llo_original>
// kernel: tpu_custom_call.1
$region0: #{tpu_custom_call.1}
  #allocation0 [shape = 'u32[]', space=smem, size = 0x4, offset = 0x4, fixed_abs, tag = 'smem constant byte address 0x4 - core index']
  #allocation1 [shape = 'u32[72,128]{1,0:T(1,128)}', space=vmem, size = 0x9000, scoped, tag = 'internal scratch']
  %s0 = inlined_call_operand.vmem [shape: f32[16,32], index: 0, kind: input, shape index: {}]
  %s1 = inlined_call_operand.vmem [shape: f32[32,4], index: 1, kind: input, shape index: {}]
  %s2 = inlined_call_operand.vmem [shape: f32[4,32], index: 2, kind: input, shape index: {}]
  %s3 = inlined_call_operand.hbm [shape: f32[16,32], index: 3, kind: output, shape index: {}]
  %s4 = sld [smem:[#allocation0]]
  $region22: #{tpu_custom_call.1} parent=0
    _
  %s6 = ssub.s32 1, %s4
  %s7 = scalar_select 0, %s6, %s4
  $region1: #{tpu_custom_call.1} parent=0
    #allocation2 [shape = 'u8[8192]{0}', space=vmem, size = 0x2000, scoped, tag = 'output window, operand 0, single buffered']
    #allocation3 [shape = 's32[1]{0}', space=sflag, size = 0x4, scoped, tag = 'scoped memory for tpu_custom_call.1']
    %8 = vsyncpa [#allocation3], 0
    // Predicated region
    $region2: #{tpu_custom_call.1} parent=1 // pred_check
      _
    $region3: #{tpu_custom_call.1} parent=1 // pred_check_branch
      %10 = sbr.rel (0) target = $region5
    $region4: #{tpu_custom_call.1} parent=1 // pred_region
      _
    $region5: #{tpu_custom_call.1} parent=1 // pred_fallthru
      _
    // Predicated region
    $region6: #{tpu_custom_call.1} parent=1 // pred_check
      _
    $region7: #{tpu_custom_call.1} parent=1 // pred_check_branch
      %12 = sbr.rel (0) target = $region9
    $region8: #{tpu_custom_call.1} parent=1 // pred_region
      _
    $region9: #{tpu_custom_call.1} parent=1 // pred_fallthru
      _
    // Predicated region
    $region10: #{tpu_custom_call.1} parent=1 // pred_check
      _
    $region11: #{tpu_custom_call.1} parent=1 // pred_check_branch
      %14 = sbr.rel (0) target = $region13
    $region12: #{tpu_custom_call.1} parent=1 // pred_region
      _
    $region13: #{tpu_custom_call.1} parent=1 // pred_fallthru
      _
    %v15 = vld [vmem:[%s0] sm:$0xff]
    %v16 = vld [vmem:[%s0 + $0x8] sm:$0xff]
    %v17 = vld [vmem:[%s1] sm:$0xff]
    %v18 = vld [vmem:[%s1 + $0x8] sm:$0xff]
    %v19 = vld [vmem:[%s1 + $0x10] sm:$0xff]
    %v20 = vld [vmem:[%s1 + $0x18] sm:$0xff]
    %vm21 = vcmask 261120
    %v23 = vsel %vm21, %v15, 0
    %v26 = vsel %vm21, %v16, 0
    %28 = vmatpush.msra.mxu0 0.0
    %29 = vmatpush.msra.mxu0 0.0
    %30 = vmatpush.msra.mxu0 0.0
    %31 = vmatpush.msra.mxu0 0.0
    %32 = vmatpush.msra.mxu0 0.0
    %33 = vmatpush.msra.mxu0 0.0
    %34 = vmatpush.msra.mxu0 0.0
    %35 = vmatpush.msra.mxu0 0.0
    %36 = vmatpush.msra.mxu0 0.0
    %37 = vmatpush.msra.mxu0 0.0
    %38 = vmatpush.msra.mxu0 0.0
    %39 = vmatpush.msra.mxu0 0.0
    %40 = vmatpush.msra.mxu0 %v20
    %41 = vmatpush.msra.mxu0 %v19
    %42 = vmatpush.msra.mxu0 %v18
    %43 = vmatpush.msra.mxu0 %v17
    %44 = vmatmul.f32.gmra.mxu0 %v23
    %v45 = vpop.f32.mrf.mxu0
    %v46 = vadd.f32 0.0, %v45
    %47 = vmatmul.f32.gmra.mxu0 %v26
    %v48 = vpop.f32.mrf.mxu0
    %v49 = vadd.f32 0.0, %v48
    %50 = vdwg.mxu0
    %v51 = vmul.f32 %v46, 0.25
    %v52 = vmul.f32 %v49, 0.25
    %v53 = vld [vmem:[%s2] sm:$0xf]
    %vm54 = vcmask 31744
    %v56 = vsel %vm54, %v51, 0
    %v59 = vsel %vm54, %v52, 0
    %vm61 = vcmask 1043456
    %v63 = vsel %vm61, %v53, 0
    %65 = vmatpush.msra.mxu0 0.0
    %66 = vmatpush.msra.mxu0 0.0
    %67 = vmatpush.msra.mxu0 0.0
    %68 = vmatpush.msra.mxu0 0.0
    %69 = vmatpush.msra.mxu0 0.0
    %70 = vmatpush.msra.mxu0 0.0
    %71 = vmatpush.msra.mxu0 0.0
    %72 = vmatpush.msra.mxu0 0.0
    %73 = vmatpush.msra.mxu0 0.0
    %74 = vmatpush.msra.mxu0 0.0
    %75 = vmatpush.msra.mxu0 0.0
    %76 = vmatpush.msra.mxu0 0.0
    %77 = vmatpush.msra.mxu0 0.0
    %78 = vmatpush.msra.mxu0 0.0
    %79 = vmatpush.msra.mxu0 0.0
    %80 = vmatpush.msra.mxu0 %v63
    %81 = vmatmul.f32.gmra.mxu0 %v56
    %v82 = vpop.f32.mrf.mxu0
    %v83 = vadd.f32 0.0, %v82
    %84 = vmatmul.f32.gmra.mxu0 %v59
    %v85 = vpop.f32.mrf.mxu0
    %v86 = vadd.f32 0.0, %v85
    %87 = vdwg.mxu0
    %88 = vst.msk [vmem:[#allocation2] sm:$0xff] %vm21, %v83
    %89 = vst.msk [vmem:[#allocation2 + $0x8] sm:$0xff] %vm21, %v86
    // Predicated region
    $region14: #{tpu_custom_call.1} parent=1 // pred_check
      _
    $region15: #{tpu_custom_call.1} parent=1 // pred_check_branch
      %91 = sbr.rel (0) target = $region17
    $region16: #{tpu_custom_call.1} parent=1 // pred_region
      %93 = vsyncadd [#allocation3], 0
      %s94 = sshll.u32 [#allocation2], 4
      %s95 = int_to_ptr.vmem [resolvable:$true] %s94
      %s96 = sshll.u32 %s3, 4
      %s97 = int_to_ptr.hbm [resolvable:$true] %s96
      %102 = dma.vmem_to_hbm [thread:$0]  %s95, 256, %s97, [#allocation3], 128, 128, 8
    $region17: #{tpu_custom_call.1} parent=1 // pred_fallthru
      _
    // Predicated region
    $region18: #{tpu_custom_call.1} parent=1 // pred_check
      _
    $region19: #{tpu_custom_call.1} parent=1 // pred_check_branch
      %104 = sbr.rel (0) target = $region21
    $region20: #{tpu_custom_call.1} parent=1 // pred_region
      %106 = dma.done [#allocation3], 256
    $region21: #{tpu_custom_call.1} parent=1 // pred_fallthru
      _
    %107 = vsyncpa [#allocation3], 1

</llo_original>
